<compile_context>
chip_gen: v6e
topology: v6e:2x2x1
jax: 0.10.0
libtpu: 0.0.40
codegen_flags: <defaults>
</compile_context>

<pallas_src>
import math

import jax
import jax.numpy as jnp
from jax import lax
from jax.experimental import pallas as pl
from jax.experimental.pallas import tpu as pltpu

GROUPS = 16
GN_EPS = 1e-5


# ---------------------------------------------------------------------------
# Pallas kernel: conv_x (im2col matmul) + GroupNorm + GLIF state update,
# one batch image per grid step, working layout (C, H*W).
# ---------------------------------------------------------------------------
def _glif_kernel(xpT_ref,                 # (k*k*Cin, HW)  bf16 im2col patches
                 h_ref, g_ref,            # (C, HW) f32    membrane / prev spikes
                 w_ref,                   # (C, k*k*Cin)   bf16 conv weight
                 m_ref,                   # (C, C) f32     group indicator / n
                 coef_ref,                # (C, 8) f32     per-channel coefficients
                 s_out_ref, u_out_ref):   # (C, HW) f32    spikes / new membrane

    # --- conv_x as a single MXU matmul (bf16 operands, f32 accumulation) ---
    conv = jnp.dot(w_ref[...], xpT_ref[...], preferred_element_type=jnp.float32)

    cf = coef_ref[...]                    # (C, 8)
    gn_w   = cf[:, 0:1]
    gn_b   = cf[:, 1:2]
    c_in   = cf[:, 2:3]                   # 1 - beta*(1-conduct)
    c_keep = cf[:, 3:4]                   # 1 - alpha*(1-tau)
    c_leak = cf[:, 4:5]                   # (1-alpha)*leak
    c_ga   = cf[:, 5:6]                   # gamma
    c_rev  = cf[:, 6:7]                   # (1-gamma)*reVth
    v_th   = cf[:, 7:8]                   # Vth

    # --- GroupNorm(16): batched group statistics via one tiny matmul -------
    colsum = jnp.sum(conv, axis=1, keepdims=True)          # (C, 1)
    colsq  = jnp.sum(conv * conv, axis=1, keepdims=True)   # (C, 1)
    stats  = jnp.concatenate([colsum, colsq], axis=1)      # (C, 2)
    gstats = jnp.dot(m_ref[...], stats,                    # group mean / E[x^2]
                     preferred_element_type=jnp.float32)   # (C, 2)
    mean = gstats[:, 0:1]
    var  = gstats[:, 1:2] - mean * mean                    # biased, as in torch
    inv  = lax.rsqrt(var + GN_EPS)
    x_gn = (conv - mean) * (inv * gn_w) + gn_b

    # --- LIFSpike_CW.extended_state_update (static_gate + soft_mode) -------
    h = h_ref[...]
    g = g_ref[...]
    i_t = x_gn * c_in
    u_new = c_keep * h * (1.0 - c_ga * g) - c_leak + i_t - c_rev * g
    s_t = (u_new - v_th > 0.0).astype(jnp.float32)         # SpikeAct: gt(., 0)

    s_out_ref[...] = s_t
    u_out_ref[...] = u_new


# ---------------------------------------------------------------------------
# Wrapper: layout conversion + parameter folding (glue, done in JAX)
# ---------------------------------------------------------------------------
def _im2col_T(x, k, stride):
    """(B, Cin, H, W) -> (B, k*k*Cin, Ho*Wo); rows ordered (tap-major, then ci)."""
    B, Cin, H, W = x.shape
    p = k // 2
    xp = jnp.pad(x, ((0, 0), (0, 0), (p, p), (p, p)))
    Ho = (H + 2 * p - k) // stride + 1
    Wo = (W + 2 * p - k) // stride + 1
    taps = []
    for dy in range(k):
        for dx in range(k):
            ys = slice(dy, dy + stride * (Ho - 1) + 1, stride)
            xs = slice(dx, dx + stride * (Wo - 1) + 1, stride)
            taps.append(xp[:, :, ys, xs])
    pat = jnp.stack(taps, axis=1)                            # (B, k*k, Cin, Ho, Wo)
    return pat.reshape(B, k * k * Cin, Ho * Wo), Ho, Wo


def glif_forward_pallas(params, x_t, h_t, g_t, *, filter_size, stride=1):
    B, Cin, H, W = x_t.shape
    C = h_t.shape[1]
    k = filter_size
    assert C % GROUPS == 0, "num_hidden must be divisible by 16 groups"
    Cpg = C // GROUPS

    x_patch, Ho, Wo = _im2col_T(x_t, k, stride)              # (B, kkCin, HW)
    assert (Ho, Wo) == (h_t.shape[2], h_t.shape[3]), "state/conv shape mismatch"
    HW = Ho * Wo
    kkCin = k * k * Cin

    # conv weight OIHW (C, Cin, k, k) -> (C, k*k*Cin), tap-major columns
    w_mat = jnp.transpose(params['conv_x_w'], (0, 2, 3, 1)).reshape(C, kkCin)

    # bf16 MXU operands (f32 accumulation happens in-kernel)
    x_patch = x_patch.astype(jnp.bfloat16)
    w_mat = w_mat.astype(jnp.bfloat16)

    # NCHW states flattened -> (B, C, HW): pure reshape, no transpose needed
    h_flat = h_t.reshape(B, C, HW)
    g_flat = g_t.reshape(B, C, HW)

    # group-indicator matrix with 1/n folded in (broadcasts group stats back)
    gidx = jnp.arange(C) // Cpg
    m_grp = (gidx[:, None] == gidx[None, :]).astype(jnp.float32) / float(Cpg * HW)

    # per-channel gating coefficients (LIFSpike_CW: static_gate=True, soft_mode=True)
    sig = jax.nn.sigmoid
    al = sig(params['alpha'])
    be = sig(params['beta'])
    ga = sig(params['gamma'])
    tau = sig(params['tau'])
    vth = sig(params['Vth'])
    leak = sig(params['leak'])
    conduct = sig(params['conduct'][0])
    revth = sig(params['reVth'])
    coef = jnp.stack([
        params['gn_w'], params['gn_b'],
        1.0 - be * (1.0 - conduct),      # input-current gate
        1.0 - al * (1.0 - tau),          # membrane keep factor
        (1.0 - al) * leak,               # linear decay
        ga,                              # spike-reset gate
        (1.0 - ga) * revth,              # soft-reset term
        vth,                             # firing threshold
    ], axis=1).astype(jnp.float32)       # (C, 8)

    def batched(rows, cols):
        return pl.BlockSpec((None, rows, cols), lambda b: (b, 0, 0))

    def const(shape):
        return pl.BlockSpec(shape, lambda b: (0, 0))

    out_bytes = 2 * B * C * HW * 4
    in_bytes = (x_patch.size * 2 + h_flat.size * 4 + g_flat.size * 4
                + w_mat.size * 2 + m_grp.size * 4 + coef.size * 4)
    cost = pl.CostEstimate(
        flops=int(B * (2 * kkCin * C * HW + 4 * C * C + 12 * C * HW)),
        transcendentals=int(B * C),
        bytes_accessed=int(in_bytes + out_bytes))

    s_t, u_new = pl.pallas_call(
        _glif_kernel,
        out_shape=(jax.ShapeDtypeStruct((B, C, HW), jnp.float32),
                   jax.ShapeDtypeStruct((B, C, HW), jnp.float32)),
        grid=(B,),
        in_specs=[
            batched(kkCin, HW),          # x im2col patches (bf16)
            batched(C, HW),              # h_t
            batched(C, HW),              # g_t
            const((C, kkCin)),           # conv weight (bf16)
            const((C, C)),               # group matrix / n
            const((C, 8)),               # per-channel coefficients
        ],
        out_specs=[batched(C, HW), batched(C, HW)],
        compiler_params=pltpu.CompilerParams(
            dimension_semantics=("parallel",)),
        cost_estimate=cost,
    )(x_patch, h_flat, g_flat, w_mat, m_grp, coef)

    return s_t.reshape(B, C, Ho, Wo), u_new.reshape(B, C, Ho, Wo)


# ---------------------------------------------------------------------------
# Pure-JAX reference (mirrors the PyTorch GLIFCell forward exactly, f32)
# ---------------------------------------------------------------------------
def glif_forward_ref(params, x_t, h_t, g_t, *, filter_size, stride=1):
    p = filter_size // 2
    conv = lax.conv_general_dilated(
        x_t, params['conv_x_w'], (stride, stride), ((p, p), (p, p)),
        dimension_numbers=('NCHW', 'OIHW', 'NCHW'))
    B, C, H, W = conv.shape
    xr = conv.reshape(B, GROUPS, -1)
    mean = xr.mean(axis=-1, keepdims=True)
    var = ((xr - mean) ** 2).mean(axis=-1, keepdims=True)
    xn = ((xr - mean) / jnp.sqrt(var + GN_EPS)).reshape(B, C, H, W)
    out = xn * params['gn_w'].reshape(1, C, 1, 1) + params['gn_b'].reshape(1, C, 1, 1)

    sig = jax.nn.sigmoid

    def cw(v):
        return v.reshape(1, C, 1, 1)

    al, be, ga = cw(sig(params['alpha'])), cw(sig(params['beta'])), cw(sig(params['gamma']))
    tau, vth, leak = cw(sig(params['tau'])), cw(sig(params['Vth'])), cw(sig(params['leak']))
    conduct, revth = cw(sig(params['conduct'][0])), cw(sig(params['reVth']))

    i_t = out * (1.0 - be * (1.0 - conduct))
    u_new = ((1.0 - al * (1.0 - tau)) * h_t * (1.0 - ga * g_t)
             - (1.0 - al) * leak + i_t - (1.0 - ga) * revth * g_t)
    s_t = (u_new - vth > 0.0).astype(jnp.float32)
    return s_t, u_new


# ---------------------------------------------------------------------------
if __name__ == "__main__":
    B, Cin, C, H, W = 2, 4, 32, 16, 16       # num_hidden divisible by 16 groups
    k, stride = 3, 1

    def logit(p):
        return -math.log(1.0 / p - 1.0)

    key = jax.random.PRNGKey(0)
    ks = jax.random.split(key, 16)

    def per_ch(base, kk):
        return base + 0.3 * jax.random.normal(kk, (C,), jnp.float32)

    # GLIFCell defaults: gate=[0.6, 0.8, 0.6], param=[0.25, 0.5, 0.0625, 0.5];
    # small per-channel noise added so the channel-wise math is exercised.
    params = {
        'conv_x_w': 0.1 * jax.random.normal(ks[0], (C, Cin, k, k), jnp.float32),
        'gn_w': 1.0 + 0.1 * jax.random.normal(ks[1], (C,), jnp.float32),
        'gn_b': 0.1 * jax.random.normal(ks[2], (C,), jnp.float32),
        'alpha': per_ch(logit((0.6 - 0.5) * 0.5 + 0.5), ks[3]),
        'beta':  per_ch(logit((0.8 - 0.5) * 0.5 + 0.5), ks[4]),
        'gamma': per_ch(logit((0.6 - 0.5) * 0.5 + 0.5), ks[5]),
        'tau':   per_ch(logit(0.25), ks[6]),
        'Vth':   per_ch(logit(0.5), ks[7]),
        'leak':  per_ch(logit(0.0625), ks[8]),
        'reVth': per_ch(logit(0.5), ks[9]),
        'conduct': logit(0.5) + 0.3 * jax.random.normal(ks[10], (1, C), jnp.float32),
    }

    x_t = jax.random.normal(ks[11], (B, Cin, H, W), jnp.float32)
    h_t = jax.random.normal(ks[12], (B, C, H, W), jnp.float32)
    g_t = (jax.random.uniform(ks[13], (B, C, H, W)) < 0.5).astype(jnp.float32)

    s_k, u_k = glif_forward_pallas(params, x_t, h_t, g_t,
                                   filter_size=k, stride=stride)
    jax.block_until_ready((s_k, u_k))

    s_r, u_r = glif_forward_ref(params, x_t, h_t, g_t,
                                filter_size=k, stride=stride)

    # membrane potential: tolerance covers the bf16 matmul operands
    assert jnp.allclose(u_k, u_r, rtol=2e-2, atol=3e-2), "membrane potential mismatch"
    # spikes: Heaviside is discontinuous at the threshold; compare away from it
    vth_c = jax.nn.sigmoid(params['Vth']).reshape(1, C, 1, 1)
    safe = jnp.abs(u_r - vth_c) > 5e-2
    assert bool(jnp.all(jnp.where(safe, s_k == s_r, True))), "spike mismatch"

    print("KERNEL_OK")
</pallas_src>

<mosaic_0001>
module attributes {stable_mosaic.version = 11 : i64} {
  func.func @_glif_kernel(%arg0: i32, %arg1: memref<1x36x256xbf16, #tpu.memory_space<vmem>>, %arg2: memref<1x32x256xf32, #tpu.memory_space<vmem>>, %arg3: memref<1x32x256xf32, #tpu.memory_space<vmem>>, %arg4: memref<32x36xbf16, #tpu.memory_space<vmem>>, %arg5: memref<32x32xf32, #tpu.memory_space<vmem>>, %arg6: memref<32x8xf32, #tpu.memory_space<vmem>>, %arg7: memref<1x32x256xf32, #tpu.memory_space<vmem>>, %arg8: memref<1x32x256xf32, #tpu.memory_space<vmem>>) attributes {dimension_semantics = [#tpu.dimension_semantics<parallel>], iteration_bounds = array<i64: 2>, scalar_prefetch = 0 : i64, scratch_operands = 0 : i64, tpu.core_type = #tpu.core_type<tc>, window_params = [{transform_indices = @transform_0, window_bounds = array<i64: 1, 36, 256>}, {transform_indices = @transform_1, window_bounds = array<i64: 1, 32, 256>}, {transform_indices = @transform_2, window_bounds = array<i64: 1, 32, 256>}, {pipeline_mode = #tpu.pipeline_mode<synchronous>, transform_indices = @transform_3, window_bounds = array<i64: 32, 36>}, {pipeline_mode = #tpu.pipeline_mode<synchronous>, transform_indices = @transform_4, window_bounds = array<i64: 32, 32>}, {pipeline_mode = #tpu.pipeline_mode<synchronous>, transform_indices = @transform_5, window_bounds = array<i64: 32, 8>}, {transform_indices = @transform_6, window_bounds = array<i64: 1, 32, 256>}, {transform_indices = @transform_7, window_bounds = array<i64: 1, 32, 256>}]} {
    %c0 = arith.constant 0 : index
    %c0_0 = arith.constant 0 : index
    %0 = vector.load %arg4[%c0, %c0_0] : memref<32x36xbf16, #tpu.memory_space<vmem>>, vector<32x36xbf16>
    %c0_1 = arith.constant 0 : index
    %c0_2 = arith.constant 0 : index
    %c0_3 = arith.constant 0 : index
    %1 = vector.load %arg1[%c0_1, %c0_2, %c0_3] : memref<1x36x256xbf16, #tpu.memory_space<vmem>>, vector<1x36x256xbf16>
    %2 = vector.shape_cast %1 : vector<1x36x256xbf16> to vector<36x256xbf16>
    %cst = arith.constant dense<0.000000e+00> : vector<32x256xf32>
    %3 = tpu.matmul %0, %2, %cst {dimension_numbers = #tpu.dot_dimension_numbers<[1], [0], [0], [1], [0, 0, 1, 1], [], []>} : vector<32x36xbf16>, vector<36x256xbf16>, vector<32x256xf32> -> vector<32x256xf32>
    %c0_4 = arith.constant 0 : index
    %c0_5 = arith.constant 0 : index
    %4 = vector.load %arg6[%c0_4, %c0_5] : memref<32x8xf32, #tpu.memory_space<vmem>>, vector<32x8xf32>
    %5 = vector.extract_strided_slice %4 {offsets = [0, 0], sizes = [32, 1], strides = [1, 1]} : vector<32x8xf32> to vector<32x1xf32>
    %6 = vector.extract_strided_slice %4 {offsets = [0, 1], sizes = [32, 1], strides = [1, 1]} : vector<32x8xf32> to vector<32x1xf32>
    %7 = vector.extract_strided_slice %4 {offsets = [0, 2], sizes = [32, 1], strides = [1, 1]} : vector<32x8xf32> to vector<32x1xf32>
    %8 = vector.extract_strided_slice %4 {offsets = [0, 3], sizes = [32, 1], strides = [1, 1]} : vector<32x8xf32> to vector<32x1xf32>
    %9 = vector.extract_strided_slice %4 {offsets = [0, 4], sizes = [32, 1], strides = [1, 1]} : vector<32x8xf32> to vector<32x1xf32>
    %10 = vector.extract_strided_slice %4 {offsets = [0, 5], sizes = [32, 1], strides = [1, 1]} : vector<32x8xf32> to vector<32x1xf32>
    %11 = vector.extract_strided_slice %4 {offsets = [0, 6], sizes = [32, 1], strides = [1, 1]} : vector<32x8xf32> to vector<32x1xf32>
    %12 = vector.extract_strided_slice %4 {offsets = [0, 7], sizes = [32, 1], strides = [1, 1]} : vector<32x8xf32> to vector<32x1xf32>
    %cst_6 = arith.constant dense<0.000000e+00> : vector<32xf32>
    %13 = vector.multi_reduction <add>, %3, %cst_6 [1] : vector<32x256xf32> to vector<32xf32>
    %14 = vector.shape_cast %13 : vector<32xf32> to vector<32x1xf32>
    %15 = arith.mulf %3, %3 : vector<32x256xf32>
    %cst_7 = arith.constant dense<0.000000e+00> : vector<32xf32>
    %16 = vector.multi_reduction <add>, %15, %cst_7 [1] : vector<32x256xf32> to vector<32xf32>
    %17 = vector.shape_cast %16 : vector<32xf32> to vector<32x1xf32>
    %18 = tpu.concatenate %14, %17 in 1 : vector<32x1xf32>, vector<32x1xf32> -> vector<32x2xf32>
    %c0_8 = arith.constant 0 : index
    %c0_9 = arith.constant 0 : index
    %19 = vector.load %arg5[%c0_8, %c0_9] : memref<32x32xf32, #tpu.memory_space<vmem>>, vector<32x32xf32>
    %cst_10 = arith.constant dense<0.000000e+00> : vector<32x2xf32>
    %20 = tpu.matmul %19, %18, %cst_10 {dimension_numbers = #tpu.dot_dimension_numbers<[1], [0], [0], [1], [0, 0, 1, 1], [], []>} : vector<32x32xf32>, vector<32x2xf32>, vector<32x2xf32> -> vector<32x2xf32>
    %21 = vector.extract_strided_slice %20 {offsets = [0, 0], sizes = [32, 1], strides = [1, 1]} : vector<32x2xf32> to vector<32x1xf32>
    %22 = vector.extract_strided_slice %20 {offsets = [0, 1], sizes = [32, 1], strides = [1, 1]} : vector<32x2xf32> to vector<32x1xf32>
    %23 = arith.mulf %21, %21 : vector<32x1xf32>
    %24 = arith.subf %22, %23 : vector<32x1xf32>
    %cst_11 = arith.constant 9.99999974E-6 : f32
    %25 = vector.broadcast %cst_11 : f32 to vector<32x1xf32>
    %26 = arith.addf %24, %25 : vector<32x1xf32>
    %27 = math.rsqrt %26 : vector<32x1xf32>
    %28 = vector.broadcast %21 : vector<32x1xf32> to vector<32x256xf32>
    %29 = arith.subf %3, %28 : vector<32x256xf32>
    %30 = arith.mulf %27, %5 : vector<32x1xf32>
    %31 = vector.broadcast %30 : vector<32x1xf32> to vector<32x256xf32>
    %32 = arith.mulf %29, %31 : vector<32x256xf32>
    %33 = vector.broadcast %6 : vector<32x1xf32> to vector<32x256xf32>
    %34 = arith.addf %32, %33 : vector<32x256xf32>
    %c0_12 = arith.constant 0 : index
    %c0_13 = arith.constant 0 : index
    %c0_14 = arith.constant 0 : index
    %35 = vector.load %arg2[%c0_12, %c0_13, %c0_14] : memref<1x32x256xf32, #tpu.memory_space<vmem>>, vector<1x32x256xf32>
    %36 = vector.shape_cast %35 : vector<1x32x256xf32> to vector<32x256xf32>
    %c0_15 = arith.constant 0 : index
    %c0_16 = arith.constant 0 : index
    %c0_17 = arith.constant 0 : index
    %37 = vector.load %arg3[%c0_15, %c0_16, %c0_17] : memref<1x32x256xf32, #tpu.memory_space<vmem>>, vector<1x32x256xf32>
    %38 = vector.shape_cast %37 : vector<1x32x256xf32> to vector<32x256xf32>
    %39 = vector.broadcast %7 : vector<32x1xf32> to vector<32x256xf32>
    %40 = arith.mulf %34, %39 : vector<32x256xf32>
    %41 = vector.broadcast %8 : vector<32x1xf32> to vector<32x256xf32>
    %42 = arith.mulf %41, %36 : vector<32x256xf32>
    %43 = vector.broadcast %10 : vector<32x1xf32> to vector<32x256xf32>
    %44 = arith.mulf %43, %38 : vector<32x256xf32>
    %cst_18 = arith.constant 1.000000e+00 : f32
    %45 = vector.broadcast %cst_18 : f32 to vector<32x256xf32>
    %46 = arith.subf %45, %44 : vector<32x256xf32>
    %47 = arith.mulf %42, %46 : vector<32x256xf32>
    %48 = vector.broadcast %9 : vector<32x1xf32> to vector<32x256xf32>
    %49 = arith.subf %47, %48 : vector<32x256xf32>
    %50 = arith.addf %49, %40 : vector<32x256xf32>
    %51 = vector.broadcast %11 : vector<32x1xf32> to vector<32x256xf32>
    %52 = arith.mulf %51, %38 : vector<32x256xf32>
    %53 = arith.subf %50, %52 : vector<32x256xf32>
    %54 = vector.broadcast %12 : vector<32x1xf32> to vector<32x256xf32>
    %55 = arith.subf %53, %54 : vector<32x256xf32>
    %cst_19 = arith.constant 0.000000e+00 : f32
    %56 = vector.broadcast %cst_19 : f32 to vector<32x256xf32>
    %57 = arith.cmpf ogt, %55, %56 : vector<32x256xf32>
    %58 = arith.extui %57 : vector<32x256xi1> to vector<32x256xi32>
    %59 = arith.sitofp %58 : vector<32x256xi32> to vector<32x256xf32>
    %c0_20 = arith.constant 0 : index
    %c0_21 = arith.constant 0 : index
    %c0_22 = arith.constant 0 : index
    %60 = vector.load %arg7[%c0_20, %c0_21, %c0_22] : memref<1x32x256xf32, #tpu.memory_space<vmem>>, vector<1x32x256xf32>
    %61 = vector.shape_cast %60 : vector<1x32x256xf32> to vector<32x256xf32>
    %62 = vector.shape_cast %59 : vector<32x256xf32> to vector<1x32x256xf32>
    tpu.vector_store %arg7[%c0_20, %c0_21, %c0_22], %62 {strides = array<i32>} : memref<1x32x256xf32, #tpu.memory_space<vmem>>, vector<1x32x256xf32>,
    %c0_23 = arith.constant 0 : index
    %c0_24 = arith.constant 0 : index
    %c0_25 = arith.constant 0 : index
    %63 = vector.load %arg8[%c0_23, %c0_24, %c0_25] : memref<1x32x256xf32, #tpu.memory_space<vmem>>, vector<1x32x256xf32>
    %64 = vector.shape_cast %63 : vector<1x32x256xf32> to vector<32x256xf32>
    %65 = vector.shape_cast %53 : vector<32x256xf32> to vector<1x32x256xf32>
    tpu.vector_store %arg8[%c0_23, %c0_24, %c0_25], %65 {strides = array<i32>} : memref<1x32x256xf32, #tpu.memory_space<vmem>>, vector<1x32x256xf32>,
    return
  }
  func.func @transform_0(%arg0: i32) -> (i32, i32, i32) {
    %c0_i32 = arith.constant 0 : i32
    %c0_i32_0 = arith.constant 0 : i32
    %c0_i32_1 = arith.constant 0 : i32
    return %arg0, %c0_i32, %c0_i32_0 : i32, i32, i32
  }
  func.func @transform_1(%arg0: i32) -> (i32, i32, i32) {
    %c0_i32 = arith.constant 0 : i32
    %c0_i32_0 = arith.constant 0 : i32
    %c0_i32_1 = arith.constant 0 : i32
    return %arg0, %c0_i32, %c0_i32_0 : i32, i32, i32
  }
  func.func @transform_2(%arg0: i32) -> (i32, i32, i32) {
    %c0_i32 = arith.constant 0 : i32
    %c0_i32_0 = arith.constant 0 : i32
    %c0_i32_1 = arith.constant 0 : i32
    return %arg0, %c0_i32, %c0_i32_0 : i32, i32, i32
  }
  func.func @transform_3(%arg0: i32) -> (i32, i32) {
    %c0_i32 = arith.constant 0 : i32
    %c0_i32_0 = arith.constant 0 : i32
    %c0_i32_1 = arith.constant 0 : i32
    return %c0_i32, %c0_i32_0 : i32, i32
  }
  func.func @transform_4(%arg0: i32) -> (i32, i32) {
    %c0_i32 = arith.constant 0 : i32
    %c0_i32_0 = arith.constant 0 : i32
    %c0_i32_1 = arith.constant 0 : i32
    return %c0_i32, %c0_i32_0 : i32, i32
  }
  func.func @transform_5(%arg0: i32) -> (i32, i32) {
    %c0_i32 = arith.constant 0 : i32
    %c0_i32_0 = arith.constant 0 : i32
    %c0_i32_1 = arith.constant 0 : i32
    return %c0_i32, %c0_i32_0 : i32, i32
  }
  func.func @transform_6(%arg0: i32) -> (i32, i32, i32) {
    %c0_i32 = arith.constant 0 : i32
    %c0_i32_0 = arith.constant 0 : i32
    %c0_i32_1 = arith.constant 0 : i32
    return %arg0, %c0_i32, %c0_i32_0 : i32, i32, i32
  }
  func.func @transform_7(%arg0: i32) -> (i32, i32, i32) {
    %c0_i32 = arith.constant 0 : i32
    %c0_i32_0 = arith.constant 0 : i32
    %c0_i32_1 = arith.constant 0 : i32
    return %arg0, %c0_i32, %c0_i32_0 : i32, i32, i32
  }
}

</mosaic_0001>

<llo_original>
// kernel: tpu_custom_call.1
$region0: #{tpu_custom_call.1}
  #allocation0 [shape = 'u32[]', space=smem, size = 0x4, offset = 0x4, fixed_abs, tag = 'smem constant byte address 0x4 - core index']
  #allocation1 [shape = 'u32[144,128]{1,0:T(1,128)}', space=vmem, size = 0x12000, scoped, tag = 'internal scratch']
  %s0 = inlined_call_operand.vmem [shape: bf16[2,36,256], index: 0, kind: input, shape index: {}]
  %s1 = inlined_call_operand.vmem [shape: f32[2,32,256], index: 1, kind: input, shape index: {}]
  %s2 = inlined_call_operand.hbm [shape: f32[2,32,256], index: 2, kind: input, shape index: {}]
  %s3 = inlined_call_operand.vmem [shape: bf16[32,36], index: 3, kind: input, shape index: {}]
  %s4 = inlined_call_operand.vmem [shape: f32[32,32], index: 4, kind: input, shape index: {}]
  %s5 = inlined_call_operand.vmem [shape: f32[32,8], index: 5, kind: input, shape index: {}]
  %s6 = inlined_call_operand.hbm [shape: f32[2,32,256], index: 6, kind: output, shape index: {0}]
  %s7 = inlined_call_operand.hbm [shape: f32[2,32,256], index: 7, kind: output, shape index: {1}]
  %8 = xla_tuple %s6, %s7
  %s9 = sld [smem:[#allocation0]]
  $region69: #{tpu_custom_call.1} parent=0
    _
  %s11 = ssub.s32 1, %s9
  %s12 = scalar_select 0, %s11, %s9
  $region1: #{tpu_custom_call.1} parent=0
    #allocation2 [shape = 'u8[65536]{0}', space=vmem, size = 0x10000, scoped, tag = 'input window, operand 2']
    #allocation3 [shape = 's32[2]{0}', space=sflag, size = 0x8, scoped, tag = 'scoped memory for tpu_custom_call.1']
    #allocation4 [shape = 's32[2]{0}', space=sflag, size = 0x8, scoped, tag = 'scoped memory for tpu_custom_call.1']
    #allocation5 [shape = 'u8[65536]{0}', space=vmem, size = 0x10000, scoped, tag = 'output window, operand 0']
    #allocation6 [shape = 'u8[65536]{0}', space=vmem, size = 0x10000, scoped, tag = 'output window, operand 1']
    #allocation7 [shape = 's32[2]{0}', space=sflag, size = 0x8, scoped, tag = 'scoped memory for tpu_custom_call.1']
    %13 = vsyncpa [#allocation3], 0
    %s14 = scalar_lea.sflag [#allocation3], 1
    %15 = vsyncpa %s14, 0
    %16 = vsyncpa [#allocation4], 0
    %s17 = scalar_lea.sflag [#allocation4], 1
    %18 = vsyncpa %s17, 0
    %19 = vsyncpa [#allocation7], 0
    %s20 = scalar_lea.sflag [#allocation7], 1
    %21 = vsyncpa %s20, 0
    loop: start=0, step=1, limit=4
    $region2: #{tpu_custom_call.1} parent=1 // loop_pre_header
      _
    $region3: #{tpu_custom_call.1} parent=1 // loop_header
      %s23 = sphi 0, %s27
      %p24 = scmp.ge.s32.totalorder %s23, 4
      %s33 = sphi 0, %s35
      %s36 = sphi 0, %s33
      %s37 = sphi 0, %s36
      %s53 = sphi 0, %s37
      %s59 = sphi 0, %s61
      %s62 = sphi 0, %s59
      %s63 = sphi 0, %s62
      %s79 = sphi 0, %s63
      %s85 = sphi 0, %s87
      %s88 = sphi 0, %s85
      %s89 = sphi 0, %s88
      %s105 = sphi 0, %s89
      %s109 = sphi 0, %s109
      %s111 = sphi 0, %s109
      %s112 = sphi 0, %s111
      %s126 = sphi 0, %s112
      %s130 = sphi 0, %s130
      %s132 = sphi 0, %s130
      %s133 = sphi 0, %s132
      %s147 = sphi 0, %s133
      %s151 = sphi 0, %s151
      %s153 = sphi 0, %s151
      %s154 = sphi 0, %s153
      %s168 = sphi 0, %s154
      %s174 = sphi 0, %s176
      %s177 = sphi 0, %s174
      %s178 = sphi 0, %s177
      %s194 = sphi 0, %s178
      %s200 = sphi 0, %s202
      %s203 = sphi 0, %s200
      %s204 = sphi 0, %s203
      %s220 = sphi 0, %s204
    $region4: #{tpu_custom_call.1} parent=1 // loop_header_branch
      %26 = sbr.rel (%p24) target = $region8
    $region5: #{tpu_custom_call.1} parent=1 // loop_body
      %s28 = ssub.s32 %s23, 1
      %s29 = ssub.s32 %s23, 2
      %s30 = sadd.s32 %s23, 1
      %s31 = ssub.s32 %s23, %s30
      %p32 = scmp.eq.s32.totalorder %s31, 0
      %s34 = sadd.s32 %s33, 1
      %s35 = scalar_select %p32, %s33, %s34
      %p38 = pneg %p32
      %p39 = scmp.eq.s32.totalorder %s23, 1
      %p40 = por %p38, %p39
      %p41 = scmp.ne.s32.totalorder %s33, %s36
      %p42 = scmp.eq.s32.totalorder %s23, 0
      %p43 = por %p41, %p42
      %p44 = scmp.ne.s32.totalorder %s33, %s36
      %p45 = scmp.eq.s32.totalorder %s28, 1
      %p46 = por %p44, %p45
      %p47 = scmp.ne.s32.totalorder %s36, %s37
      %p48 = scmp.eq.s32.totalorder %s28, 0
      %p49 = por %p47, %p48
      %p50 = scmp.ne.s32.totalorder %s36, %s37
      %p51 = scmp.eq.s32.totalorder %s29, 1
      %p52 = por %p50, %p51
      %p54 = scmp.ne.s32.totalorder %s37, %s53
      %p55 = scmp.eq.s32.totalorder %s29, 0
      %p56 = por %p54, %p55
      %s57 = ssub.s32 %s23, %s30
      %p58 = scmp.eq.s32.totalorder %s57, 0
      %s60 = sadd.s32 %s59, 1
      %s61 = scalar_select %p58, %s59, %s60
      %p64 = pneg %p58
      %p65 = scmp.eq.s32.totalorder %s23, 1
      %p66 = por %p64, %p65
      %p67 = scmp.ne.s32.totalorder %s59, %s62
      %p68 = scmp.eq.s32.totalorder %s23, 0
      %p69 = por %p67, %p68
      %p70 = scmp.ne.s32.totalorder %s59, %s62
      %p71 = scmp.eq.s32.totalorder %s28, 1
      %p72 = por %p70, %p71
      %p73 = scmp.ne.s32.totalorder %s62, %s63
      %p74 = scmp.eq.s32.totalorder %s28, 0
      %p75 = por %p73, %p74
      %p76 = scmp.ne.s32.totalorder %s62, %s63
      %p77 = scmp.eq.s32.totalorder %s29, 1
      %p78 = por %p76, %p77
      %p80 = scmp.ne.s32.totalorder %s63, %s79
      %p81 = scmp.eq.s32.totalorder %s29, 0
      %p82 = por %p80, %p81
      %s83 = ssub.s32 %s23, %s30
      %p84 = scmp.eq.s32.totalorder %s83, 0
      %s86 = sadd.s32 %s85, 1
      %s87 = scalar_select %p84, %s85, %s86
      %p90 = pneg %p84
      %p91 = scmp.eq.s32.totalorder %s23, 1
      %p92 = por %p90, %p91
      %p93 = scmp.ne.s32.totalorder %s85, %s88
      %p94 = scmp.eq.s32.totalorder %s23, 0
      %p95 = por %p93, %p94
      %p96 = scmp.ne.s32.totalorder %s85, %s88
      %p97 = scmp.eq.s32.totalorder %s28, 1
      %p98 = por %p96, %p97
      %p99 = scmp.ne.s32.totalorder %s88, %s89
      %p100 = scmp.eq.s32.totalorder %s28, 0
      %p101 = por %p99, %p100
      %p102 = scmp.ne.s32.totalorder %s88, %s89
      %p103 = scmp.eq.s32.totalorder %s29, 1
      %p104 = por %p102, %p103
      %p106 = scmp.ne.s32.totalorder %s89, %s105
      %p107 = scmp.eq.s32.totalorder %s29, 0
      %p108 = por %p106, %p107
      %s110 = sadd.s32 %s109, 1
      %p113 = scmp.eq.s32.totalorder %s23, 1
      %p114 = scmp.ne.s32.totalorder %s109, %s111
      %p115 = scmp.eq.s32.totalorder %s23, 0
      %p116 = por %p114, %p115
      %p117 = scmp.ne.s32.totalorder %s109, %s111
      %p118 = scmp.eq.s32.totalorder %s28, 1
      %p119 = por %p117, %p118
      %p120 = scmp.ne.s32.totalorder %s111, %s112
      %p121 = scmp.eq.s32.totalorder %s28, 0
      %p122 = por %p120, %p121
      %p123 = scmp.ne.s32.totalorder %s111, %s112
      %p124 = scmp.eq.s32.totalorder %s29, 1
      %p125 = por %p123, %p124
      %p127 = scmp.ne.s32.totalorder %s112, %s126
      %p128 = scmp.eq.s32.totalorder %s29, 0
      %p129 = por %p127, %p128
      %s131 = sadd.s32 %s130, 1
      %p134 = scmp.eq.s32.totalorder %s23, 1
      %p135 = scmp.ne.s32.totalorder %s130, %s132
      %p136 = scmp.eq.s32.totalorder %s23, 0
      %p137 = por %p135, %p136
      %p138 = scmp.ne.s32.totalorder %s130, %s132
      %p139 = scmp.eq.s32.totalorder %s28, 1
      %p140 = por %p138, %p139
      %p141 = scmp.ne.s32.totalorder %s132, %s133
      %p142 = scmp.eq.s32.totalorder %s28, 0
      %p143 = por %p141, %p142
      %p144 = scmp.ne.s32.totalorder %s132, %s133
      %p145 = scmp.eq.s32.totalorder %s29, 1
      %p146 = por %p144, %p145
      %p148 = scmp.ne.s32.totalorder %s133, %s147
      %p149 = scmp.eq.s32.totalorder %s29, 0
      %p150 = por %p148, %p149
      %s152 = sadd.s32 %s151, 1
      %p155 = scmp.eq.s32.totalorder %s23, 1
      %p156 = scmp.ne.s32.totalorder %s151, %s153
      %p157 = scmp.eq.s32.totalorder %s23, 0
      %p158 = por %p156, %p157
      %p159 = scmp.ne.s32.totalorder %s151, %s153
      %p160 = scmp.eq.s32.totalorder %s28, 1
      %p161 = por %p159, %p160
      %p162 = scmp.ne.s32.totalorder %s153, %s154
      %p163 = scmp.eq.s32.totalorder %s28, 0
      %p164 = por %p162, %p163
      %p165 = scmp.ne.s32.totalorder %s153, %s154
      %p166 = scmp.eq.s32.totalorder %s29, 1
      %p167 = por %p165, %p166
      %p169 = scmp.ne.s32.totalorder %s154, %s168
      %p170 = scmp.eq.s32.totalorder %s29, 0
      %p171 = por %p169, %p170
      %s172 = ssub.s32 %s23, %s30
      %p173 = scmp.eq.s32.totalorder %s172, 0
      %s175 = sadd.s32 %s174, 1
      %s176 = scalar_select %p173, %s174, %s175
      %p179 = pneg %p173
      %p180 = scmp.eq.s32.totalorder %s23, 1
      %p181 = por %p179, %p180
      %p182 = scmp.ne.s32.totalorder %s174, %s177
      %p183 = scmp.eq.s32.totalorder %s23, 0
      %p184 = por %p182, %p183
      %p185 = scmp.ne.s32.totalorder %s174, %s177
      %p186 = scmp.eq.s32.totalorder %s28, 1
      %p187 = por %p185, %p186
      %p188 = scmp.ne.s32.totalorder %s177, %s178
      %p189 = scmp.eq.s32.totalorder %s28, 0
      %p190 = por %p188, %p189
      %p191 = scmp.ne.s32.totalorder %s177, %s178
      %p192 = scmp.eq.s32.totalorder %s29, 1
      %p193 = por %p191, %p192
      %p195 = scmp.ne.s32.totalorder %s178, %s194
      %p196 = scmp.eq.s32.totalorder %s29, 0
      %p197 = por %p195, %p196
      %s198 = ssub.s32 %s23, %s30
      %p199 = scmp.eq.s32.totalorder %s198, 0
      %s201 = sadd.s32 %s200, 1
      %s202 = scalar_select %p199, %s200, %s201
      %p205 = pneg %p199
      %p206 = scmp.eq.s32.totalorder %s23, 1
      %p207 = por %p205, %p206
      %p208 = scmp.ne.s32.totalorder %s200, %s203
      %p209 = scmp.eq.s32.totalorder %s23, 0
      %p210 = por %p208, %p209
      %p211 = scmp.ne.s32.totalorder %s200, %s203
      %p212 = scmp.eq.s32.totalorder %s28, 1
      %p213 = por %p211, %p212
      %p214 = scmp.ne.s32.totalorder %s203, %s204
      %p215 = scmp.eq.s32.totalorder %s28, 0
      %p216 = por %p214, %p215
      %p217 = scmp.ne.s32.totalorder %s203, %s204
      %p218 = scmp.eq.s32.totalorder %s29, 1
      %p219 = por %p217, %p218
      %p221 = scmp.ne.s32.totalorder %s204, %s220
      %p222 = scmp.eq.s32.totalorder %s29, 0
      %p223 = por %p221, %p222
      %p224 = scmp.le.s32.totalorder 1, %s23
      %p225 = scmp.lt.s32.totalorder %s23, 3
      %p226 = pnand %p224, %p225
      %p227 = pneg %p226
      // Predicated region
      $region9: #{tpu_custom_call.1} parent=5 // pred_check
        _
      $region10: #{tpu_custom_call.1} parent=5 // pred_check_branch
        %229 = sbr.rel (%p226) target = $region12
      $region11: #{tpu_custom_call.1} parent=5 // pred_region
        %s230 = ssub.s32 %s23, 1
        // Predicated region
        $region13: #{tpu_custom_call.1} parent=11 // pred_check
          %p231 = pneg %p122
        $region14: #{tpu_custom_call.1} parent=11 // pred_check_branch
          %233 = sbr.rel (%p231) target = $region16
        $region15: #{tpu_custom_call.1} parent=11 // pred_region
          _
        $region16: #{tpu_custom_call.1} parent=11 // pred_fallthru
          _
        // Predicated region
        $region17: #{tpu_custom_call.1} parent=11 // pred_check
          %p234 = pneg %p143
        $region18: #{tpu_custom_call.1} parent=11 // pred_check_branch
          %236 = sbr.rel (%p234) target = $region20
        $region19: #{tpu_custom_call.1} parent=11 // pred_region
          _
        $region20: #{tpu_custom_call.1} parent=11 // pred_fallthru
          _
        // Predicated region
        $region21: #{tpu_custom_call.1} parent=11 // pred_check
          %p237 = pneg %p164
        $region22: #{tpu_custom_call.1} parent=11 // pred_check_branch
          %239 = sbr.rel (%p237) target = $region24
        $region23: #{tpu_custom_call.1} parent=11 // pred_region
          _
        $region24: #{tpu_custom_call.1} parent=11 // pred_fallthru
          _
      $region12: #{tpu_custom_call.1} parent=5 // pred_fallthru
        _
      %p240 = scmp.lt.s32.totalorder %s23, 2
      // Predicated region
      $region25: #{tpu_custom_call.1} parent=5 // pred_check
        %p241 = pneg %p240
      $region26: #{tpu_custom_call.1} parent=5 // pred_check_branch
        %243 = sbr.rel (%p241) target = $region28
      $region27: #{tpu_custom_call.1} parent=5 // pred_region
        // Predicated region
        $region29: #{tpu_custom_call.1} parent=27 // pred_check
          %p244 = pneg %p43
        $region30: #{tpu_custom_call.1} parent=27 // pred_check_branch
          %246 = sbr.rel (%p244) target = $region32
        $region31: #{tpu_custom_call.1} parent=27 // pred_region
          %p247 = scmp.lt.s32.totalorder %s23, 1
          %s248 = scalar_select %p247, %s23, 1
          %s249 = smul.addr %s248, 10
          %s250 = smul.addr %s249, 4
          %s251 = scalar_lea.vmem %s0, %s250
        $region32: #{tpu_custom_call.1} parent=27 // pred_fallthru
          _
        // Predicated region
        $region33: #{tpu_custom_call.1} parent=27 // pred_check
          %p252 = pneg %p69
        $region34: #{tpu_custom_call.1} parent=27 // pred_check_branch
          %254 = sbr.rel (%p252) target = $region36
        $region35: #{tpu_custom_call.1} parent=27 // pred_region
          %p255 = scmp.lt.s32.totalorder %s23, 1
          %s256 = scalar_select %p255, %s23, 1
          %s257 = smul.addr %s256, 8
          %s258 = smul.addr %s257, 8
          %s259 = scalar_lea.vmem %s1, %s258
        $region36: #{tpu_custom_call.1} parent=27 // pred_fallthru
          _
        // Predicated region
        $region37: #{tpu_custom_call.1} parent=27 // pred_check
          %p260 = pneg %p95
        $region38: #{tpu_custom_call.1} parent=27 // pred_check_branch
          %262 = sbr.rel (%p260) target = $region40
        $region39: #{tpu_custom_call.1} parent=27 // pred_region
          %s263 = sand.u32 %s85, 1
          %s264 = scalar_lea.sflag [#allocation3], %s263
          %s265 = sand.u32 %s85, 1
          %s266 = smul.addr %s265, 64
          %s267 = scalar_lea.vmem [#allocation2], %s266
          %s269 = ssub.s32 1024, 1024
          %270 = vsyncadd %s264, %s269
          %s271 = smul.addr %s23, 8
          %s272 = smul.addr %s271, 128
          %s273 = scalar_lea.hbm %s2, %s272
          %s274 = sshll.u32 %s267, 4
          %s275 = int_to_ptr.vmem [resolvable:$true] %s274
          %280 = dma.hbm_to_vmem [thread:$0]  %s273, 1024, %s275, %s264, 256, 256, 16
        $region40: #{tpu_custom_call.1} parent=27 // pred_fallthru
          _
      $region28: #{tpu_custom_call.1} parent=5 // pred_fallthru
        _
      %p281 = scmp.le.s32.totalorder 1, %s23
      %p282 = scmp.lt.s32.totalorder %s23, 3
      %p283 = pnand %p281, %p282
      %p284 = pneg %p283
      // Predicated region
      $region41: #{tpu_custom_call.1} parent=5 // pred_check
        _
      $region42: #{tpu_custom_call.1} parent=5 // pred_check_branch
        %286 = sbr.rel (%p283) target = $region44
      $region43: #{tpu_custom_call.1} parent=5 // pred_region
        %s287 = ssub.s32 %s23, 1
        %s288 = sand.u32 %s88, 1
        %s289 = scalar_lea.sflag [#allocation3], %s288
        %s290 = sand.u32 %s88, 1
        %s291 = smul.addr %s290, 64
        %s292 = scalar_lea.vmem [#allocation2], %s291
        // Predicated region
        $region45: #{tpu_custom_call.1} parent=43 // pred_check
          %p293 = pneg %p101
        $region46: #{tpu_custom_call.1} parent=43 // pred_check_branch
          %295 = sbr.rel (%p293) target = $region48
        $region47: #{tpu_custom_call.1} parent=43 // pred_region
          %296 = dma.done %s289, 1024
        $region48: #{tpu_custom_call.1} parent=43 // pred_fallthru
          _
        %p297 = scmp.lt.s32.totalorder %s28, 1
        %s298 = scalar_select %p297, %s28, 1
        %s299 = smul.addr %s298, 10
        %s300 = smul.addr %s299, 4
        %s301 = scalar_lea.vmem %s0, %s300
        %p302 = pneg %p49
        %p303 = pneg %p46
        %p304 = scmp.lt.s32.totalorder %s28, 1
        %s305 = scalar_select %p304, %s28, 1
        %s306 = smul.addr %s305, 8
        %s307 = smul.addr %s306, 8
        %s308 = scalar_lea.vmem %s1, %s307
        %p309 = pneg %p75
        %p310 = pneg %p72
        %s311 = sand.u32 %s88, 1
        %s312 = scalar_lea.sflag [#allocation3], %s311
        %s313 = sand.u32 %s88, 1
        %s314 = smul.addr %s313, 64
        %s315 = scalar_lea.vmem [#allocation2], %s314
        %p316 = pneg %p101
        %p317 = pneg %p98
        %p318 = pneg %p122
        %p319 = pneg %p119
        %p320 = pneg %p143
        %p321 = pneg %p140
        %p322 = pneg %p164
        %p323 = pneg %p161
        %p324 = pneg %p190
        %p325 = pneg %p187
        %s326 = sand.u32 %s177, 1
        %s327 = scalar_lea.sflag [#allocation4], %s326
        %s328 = sand.u32 %s177, 1
        %s329 = smul.addr %s328, 64
        %s330 = scalar_lea.vmem [#allocation5], %s329
        %p331 = pneg %p216
        %p332 = pneg %p213
        %s333 = sand.u32 %s203, 1
        %s334 = scalar_lea.sflag [#allocation7], %s333
        %s335 = sand.u32 %s203, 1
        %s336 = smul.addr %s335, 64
        %s337 = scalar_lea.vmem [#allocation6], %s336
        %p338 = scmp.lt.s32.totalorder %s28, 1
        %s339 = scalar_select %p338, %s28, 1
        %s340 = smul.addr %s339, 10
        %s341 = smul.addr %s340, 4
        %s342 = scalar_lea.vmem %s0, %s341
        %p343 = scmp.lt.s32.totalorder %s28, 1
        %s344 = scalar_select %p343, %s28, 1
        %s345 = smul.addr %s344, 8
        %s346 = smul.addr %s345, 8
        %s347 = scalar_lea.vmem %s1, %s346
        %v349 = vld [vmem:[%s3] sm:$0xf]
        %v350 = vld [vmem:[%s3 + $0x4] sm:$0xf]
        %v351 = vld [vmem:[%s3 + $0x8] sm:$0xf]
        %v352 = vld [vmem:[%s3 + $0xc] sm:$0xf]
        %v353 = vld [vmem:[%s342] sm:$0xff]
        %v354 = vld [vmem:[%s342 + $0x8] sm:$0xff]
        %v355 = vld [vmem:[%s342 + $0x10] sm:$0xff]
        %v356 = vld [vmem:[%s342 + $0x18] sm:$0xff]
        %v357 = vld [vmem:[%s342 + $0x20] sm:$0x33]
        %v362 = vunpack.c.l.b16 %v349
        %v363 = vunpack.c.l.b16 %v350
        %v364 = vunpack.c.l.b16 %v351
        %v365 = vunpack.c.l.b16 %v352
        %v366 = vpack.c.b16 %v363, %v362
        %v367 = vpack.c.b16 %v365, %v364
        %v373 = vunpack.c.l.b16 %v353
        %v374 = vunpack.c.h.b16 %v353
        %v375 = vunpack.c.l.b16 %v354
        %v376 = vunpack.c.h.b16 %v354
        %v377 = vunpack.c.l.b16 %v355
        %v378 = vunpack.c.h.b16 %v355
        %v379 = vunpack.c.l.b16 %v356
        %v380 = vunpack.c.h.b16 %v356
        %v381 = vunpack.c.l.b16 %v357
        %v382 = vunpack.c.h.b16 %v357
        %v383 = vpack.c.b16 %v375, %v373
        %v384 = vpack.c.b16 %v376, %v374
        %v385 = vpack.c.b16 %v379, %v377
        %v386 = vpack.c.b16 %v380, %v378
        %v387 = vpack.c.b16 %v381, %v381
        %v388 = vpack.c.b16 %v382, %v382
        %vm393 = vcmask 293888
        %v395 = vsel %vm393, %v366, 0
        %v398 = vsel %vm393, %v367, 0
        %vm400 = vcmask 1041408
        %v402 = vsel %vm400, %v387, 0
        %v405 = vsel %vm400, %v388, 0
        %407 = vmatprep.subr.bf16.mxu0 0
        %408 = vmatpush1.bf16.msra.mxu0 0
        %409 = vmatprep.subr.bf16.mxu0 0
        %410 = vmatpush1.bf16.msra.mxu0 0
        %411 = vmatprep.subr.bf16.mxu0 0
        %412 = vmatpush1.bf16.msra.mxu0 0
        %413 = vmatprep.subr.bf16.mxu0 0
        %414 = vmatpush1.bf16.msra.mxu0 0
        %415 = vmatprep.subr.bf16.mxu0 0
        %416 = vmatpush1.bf16.msra.mxu0 0
        %417 = vmatprep.subr.bf16.mxu0 %v405
        %418 = vmatpush1.bf16.msra.mxu0 %v402
        %419 = vmatprep.subr.bf16.mxu0 %v386
        %420 = vmatpush1.bf16.msra.mxu0 %v385
        %421 = vmatprep.subr.bf16.mxu0 %v384
        %422 = vmatpush1.bf16.msra.mxu0 %v383
        %423 = vmatprep.subr.bf16.mxu0 0
        %424 = vmatpush2.bf16.msra.mxu0 0
        %425 = vmatprep.subr.bf16.mxu0 0
        %426 = vmatpush2.bf16.msra.mxu0 0
        %427 = vmatprep.subr.bf16.mxu0 0
        %428 = vmatpush2.bf16.msra.mxu0 0
        %429 = vmatprep.subr.bf16.mxu0 0
        %430 = vmatpush2.bf16.msra.mxu0 0
        %431 = vmatprep.subr.bf16.mxu0 0
        %432 = vmatpush2.bf16.msra.mxu0 0
        %433 = vmatprep.subr.bf16.mxu0 0
        %434 = vmatpush2.bf16.msra.mxu0 0
        %435 = vmatprep.subr.bf16.mxu0 0
        %436 = vmatpush2.bf16.msra.mxu0 0
        %437 = vmatprep.subr.bf16.mxu0 0
        %438 = vmatpush2.bf16.msra.mxu0 0
        %439 = vmatprep.mubr.bf16.mxu0 0
        %440 = vmatmul.mubr.bf16.gmra.mxu0 %v395
        %v441 = vpop.f32.mrf.mxu0
        %v442 = vadd.f32 0.0, %v441
        %v443 = vpop.f32.mrf.mxu0
        %v444 = vadd.f32 0.0, %v443
        %v445 = vpop.f32.mrf.mxu0
        %v446 = vadd.f32 0.0, %v445
        %v447 = vpop.f32.mrf.mxu0
        %v448 = vadd.f32 0.0, %v447
        %449 = vmatprep.mubr.bf16.mxu0 0
        %450 = vmatmul.mubr.bf16.gmra.mxu0 %v398
        %v451 = vpop.f32.mrf.mxu0
        %v452 = vadd.f32 0.0, %v451
        %v453 = vpop.f32.mrf.mxu0
        %v454 = vadd.f32 0.0, %v453
        %v455 = vpop.f32.mrf.mxu0
        %v456 = vadd.f32 0.0, %v455
        %v457 = vpop.f32.mrf.mxu0
        %v458 = vadd.f32 0.0, %v457
        %459 = vdwg.mxu0
        %v460 = vld [vmem:[%s5] sm:$0xff]
        %v461 = vld [vmem:[%s5 + $0x8] sm:$0xff]
        %v462 = vld [vmem:[%s5 + $0x10] sm:$0xff]
        %v463 = vld [vmem:[%s5 + $0x18] sm:$0xff]
        %v464 = vadd.f32 %v442, %v444
        %465 = vadd.xlane.f32.xlu0 %v464
        %v466 = vpop.xlane.xlu0 %465
        %v467 = vadd.f32 %v446, %v448
        %468 = vadd.xlane.f32.xlu0 %v467
        %v469 = vpop.xlane.xlu0 %468
        %v470 = vadd.f32 %v452, %v454
        %471 = vadd.xlane.f32.xlu0 %v470
        %v472 = vpop.xlane.xlu0 %471
        %v473 = vadd.f32 %v456, %v458
        %474 = vadd.xlane.f32.xlu0 %v473
        %v475 = vpop.xlane.xlu0 %474
        %v476 = vmul.f32 %v442, %v442
        %v477 = vmul.f32 %v444, %v444
        %v478 = vmul.f32 %v446, %v446
        %v479 = vmul.f32 %v448, %v448
        %v480 = vmul.f32 %v452, %v452
        %v481 = vmul.f32 %v454, %v454
        %v482 = vmul.f32 %v456, %v456
        %v483 = vmul.f32 %v458, %v458
        %v484 = vadd.f32 %v476, %v477
        %485 = vadd.xlane.f32.xlu0 %v484
        %v486 = vpop.xlane.xlu0 %485
        %v487 = vadd.f32 %v478, %v479
        %488 = vadd.xlane.f32.xlu0 %v487
        %v489 = vpop.xlane.xlu0 %488
        %v490 = vadd.f32 %v480, %v481
        %491 = vadd.xlane.f32.xlu0 %v490
        %v492 = vpop.xlane.xlu0 %491
        %v493 = vadd.f32 %v482, %v483
        %494 = vadd.xlane.f32.xlu0 %v493
        %v495 = vpop.xlane.xlu0 %494
        %vm496 = vcmask 7168
        %v497 = vsel %vm496, %v466, %v486
        %v498 = vsel %vm496, %v469, %v489
        %v499 = vsel %vm496, %v472, %v492
        %v500 = vsel %vm496, %v475, %v495
        %v501 = vld [vmem:[%s4] sm:$0xff]
        %v502 = vld [vmem:[%s4 + $0x8] sm:$0xff]
        %v503 = vld [vmem:[%s4 + $0x10] sm:$0xff]
        %v504 = vld [vmem:[%s4 + $0x18] sm:$0xff]
        %vm505 = vcmask 261120
        %v507 = vsel %vm505, %v501, 0
        %v510 = vsel %vm505, %v502, 0
        %v513 = vsel %vm505, %v503, 0
        %v516 = vsel %vm505, %v504, 0
        %518 = vmatprep.subr.mxu0 0.0
        %519 = vmatpush1.msra.mxu0 0.0
        %520 = vmatprep.subr.mxu0 0.0
        %521 = vmatpush1.msra.mxu0 0.0
        %522 = vmatprep.subr.mxu0 0.0
        %523 = vmatpush1.msra.mxu0 0.0
        %524 = vmatprep.subr.mxu0 0.0
        %525 = vmatpush1.msra.mxu0 0.0
        %526 = vmatprep.subr.mxu0 0.0
        %527 = vmatpush1.msra.mxu0 0.0
        %528 = vmatprep.subr.mxu0 0.0
        %529 = vmatpush1.msra.mxu0 0.0
        %530 = vmatprep.subr.mxu0 0.0
        %531 = vmatpush1.msra.mxu0 0.0
        %532 = vmatprep.subr.mxu0 0.0
        %533 = vmatpush1.msra.mxu0 0.0
        %534 = vmatprep.subr.mxu0 0.0
        %535 = vmatpush1.msra.mxu0 0.0
        %536 = vmatprep.subr.mxu0 0.0
        %537 = vmatpush1.msra.mxu0 0.0
        %538 = vmatprep.subr.mxu0 0.0
        %539 = vmatpush1.msra.mxu0 0.0
        %540 = vmatprep.subr.mxu0 0.0
        %541 = vmatpush1.msra.mxu0 0.0
        %542 = vmatprep.subr.mxu0 0.0
        %543 = vmatpush1.msra.mxu0 %v500
        %544 = vmatprep.subr.mxu0 0.0
        %545 = vmatpush1.msra.mxu0 %v499
        %546 = vmatprep.subr.mxu0 0.0
        %547 = vmatpush1.msra.mxu0 %v498
        %548 = vmatprep.subr.mxu0 0.0
        %549 = vmatpush1.msra.mxu0 %v497
        %550 = vmatprep.subr.mxu0 0.0
        %551 = vmatpush2.msra.mxu0 0.0
        %552 = vmatprep.subr.mxu0 0.0
        %553 = vmatpush2.msra.mxu0 0.0
        %554 = vmatprep.subr.mxu0 0.0
        %555 = vmatpush2.msra.mxu0 0.0
        %556 = vmatprep.subr.mxu0 0.0
        %557 = vmatpush2.msra.mxu0 0.0
        %558 = vmatprep.subr.mxu0 0.0
        %559 = vmatpush2.msra.mxu0 0.0
        %560 = vmatprep.subr.mxu0 0.0
        %561 = vmatpush2.msra.mxu0 0.0
        %562 = vmatprep.subr.mxu0 0.0
        %563 = vmatpush2.msra.mxu0 0.0
        %564 = vmatprep.subr.mxu0 0.0
        %565 = vmatpush2.msra.mxu0 0.0
        %566 = vmatprep.subr.mxu0 0.0
        %567 = vmatpush2.msra.mxu0 0.0
        %568 = vmatprep.subr.mxu0 0.0
        %569 = vmatpush2.msra.mxu0 0.0
        %570 = vmatprep.subr.mxu0 0.0
        %571 = vmatpush2.msra.mxu0 0.0
        %572 = vmatprep.subr.mxu0 0.0
        %573 = vmatpush2.msra.mxu0 0.0
        %574 = vmatprep.subr.mxu0 0.0
        %575 = vmatpush2.msra.mxu0 0.0
        %576 = vmatprep.subr.mxu0 0.0
        %577 = vmatpush2.msra.mxu0 0.0
        %578 = vmatprep.subr.mxu0 0.0
        %579 = vmatpush2.msra.mxu0 0.0
        %580 = vmatprep.subr.mxu0 0.0
        %581 = vmatpush2.msra.mxu0 0.0
        %582 = vmatprep.mubr.f32.mxu0 0.0
        %583 = vmatmul.mubr.f32.gmra.mxu0 %v507
        %v584 = vpop.f32.mrf.mxu0
        %v585 = vadd.f32 0.0, %v584
        %v586 = vpop.f32.mrf.mxu0
        %587 = vmatprep.mubr.f32.mxu0 0.0
        %588 = vmatmul.mubr.f32.gmra.mxu0 %v510
        %v589 = vpop.f32.mrf.mxu0
        %v590 = vadd.f32 0.0, %v589
        %v591 = vpop.f32.mrf.mxu0
        %592 = vmatprep.mubr.f32.mxu0 0.0
        %593 = vmatmul.mubr.f32.gmra.mxu0 %v513
        %v594 = vpop.f32.mrf.mxu0
        %v595 = vadd.f32 0.0, %v594
        %v596 = vpop.f32.mrf.mxu0
        %597 = vmatprep.mubr.f32.mxu0 0.0
        %598 = vmatmul.mubr.f32.gmra.mxu0 %v516
        %v599 = vpop.f32.mrf.mxu0
        %v600 = vadd.f32 0.0, %v599
        %v601 = vpop.f32.mrf.mxu0
        %602 = vdwg.mxu0
        %v603 = vmul.f32 %v585, %v585
        %v604 = vmul.f32 %v590, %v590
        %v605 = vmul.f32 %v595, %v595
        %v606 = vmul.f32 %v600, %v600
        %611 = vrot.lane.b32.xlu0 %v603, 1
        %v612 = vpop.permute.xlu0 %611
        %613 = vrot.lane.b32.xlu0 %v604, 1
        %v614 = vpop.permute.xlu0 %613
        %615 = vrot.lane.b32.xlu0 %v605, 1
        %v616 = vpop.permute.xlu0 %615
        %617 = vrot.lane.b32.xlu0 %v606, 1
        %v618 = vpop.permute.xlu0 %617
        %v623 = vsub.f32 %v585, %v612
        %v624 = vsub.f32 %v590, %v614
        %v625 = vsub.f32 %v595, %v616
        %v626 = vsub.f32 %v600, %v618
        %v627 = vadd.f32 %v623, 1e-05
        %v628 = vadd.f32 %v624, 1e-05
        %v629 = vadd.f32 %v625, 1e-05
        %v630 = vadd.f32 %v626, 1e-05
        %v631 = vrsqrt.pop %v627
        %v632 = vrsqrt.pop %v628
        %v633 = vrsqrt.pop %v629
        %v634 = vrsqrt.pop %v630
        %636 = vset.pattern.permute.xlu0 0
        %637 = vperm.xlu0 %636, %v585
        %v638 = vpop.permute.xlu0 %637
        %641 = vset.pattern.permute.xlu0 0
        %642 = vperm.xlu0 %641, %v590
        %v643 = vpop.permute.xlu0 %642
        %646 = vset.pattern.permute.xlu0 0
        %647 = vperm.xlu0 %646, %v595
        %v648 = vpop.permute.xlu0 %647
        %651 = vset.pattern.permute.xlu0 0
        %652 = vperm.xlu0 %651, %v600
        %v653 = vpop.permute.xlu0 %652
        %v655 = vsub.f32 %v442, %v638
        %v656 = vsub.f32 %v444, %v638
        %v657 = vsub.f32 %v446, %v643
        %v658 = vsub.f32 %v448, %v643
        %v659 = vsub.f32 %v452, %v648
        %v660 = vsub.f32 %v454, %v648
        %v661 = vsub.f32 %v456, %v653
        %v662 = vsub.f32 %v458, %v653
        %667 = vrot.lane.b32.xlu0 %v460, 1
        %v668 = vpop.permute.xlu0 %667
        %669 = vrot.lane.b32.xlu0 %v461, 1
        %v670 = vpop.permute.xlu0 %669
        %671 = vrot.lane.b32.xlu0 %v462, 1
        %v672 = vpop.permute.xlu0 %671
        %673 = vrot.lane.b32.xlu0 %v463, 1
        %v674 = vpop.permute.xlu0 %673
        %v679 = vmul.f32 %v631, %v668
        %v680 = vmul.f32 %v632, %v670
        %v681 = vmul.f32 %v633, %v672
        %v682 = vmul.f32 %v634, %v674
        %684 = vset.pattern.permute.xlu0 1
        %685 = vperm.xlu0 %684, %v679
        %v686 = vpop.permute.xlu0 %685
        %689 = vset.pattern.permute.xlu0 1
        %690 = vperm.xlu0 %689, %v680
        %v691 = vpop.permute.xlu0 %690
        %694 = vset.pattern.permute.xlu0 1
        %695 = vperm.xlu0 %694, %v681
        %v696 = vpop.permute.xlu0 %695
        %699 = vset.pattern.permute.xlu0 1
        %700 = vperm.xlu0 %699, %v682
        %v701 = vpop.permute.xlu0 %700
        %v703 = vmul.f32 %v655, %v686
        %v704 = vmul.f32 %v656, %v686
        %v705 = vmul.f32 %v657, %v691
        %v706 = vmul.f32 %v658, %v691
        %v707 = vmul.f32 %v659, %v696
        %v708 = vmul.f32 %v660, %v696
        %v709 = vmul.f32 %v661, %v701
        %v710 = vmul.f32 %v662, %v701
        %711 = vset.pattern.permute.xlu0 1
        %712 = vperm.xlu0 %711, %v460
        %v713 = vpop.permute.xlu0 %712
        %715 = vset.pattern.permute.xlu0 1
        %716 = vperm.xlu0 %715, %v461
        %v717 = vpop.permute.xlu0 %716
        %719 = vset.pattern.permute.xlu0 1
        %720 = vperm.xlu0 %719, %v462
        %v721 = vpop.permute.xlu0 %720
        %723 = vset.pattern.permute.xlu0 1
        %724 = vperm.xlu0 %723, %v463
        %v725 = vpop.permute.xlu0 %724
        %v727 = vadd.f32 %v703, %v713
        %v728 = vadd.f32 %v704, %v713
        %v729 = vadd.f32 %v705, %v717
        %v730 = vadd.f32 %v706, %v717
        %v731 = vadd.f32 %v707, %v721
        %v732 = vadd.f32 %v708, %v721
        %v733 = vadd.f32 %v709, %v725
        %v734 = vadd.f32 %v710, %v725
        %v735 = vld [vmem:[%s347] sm:$0xff]
        %v736 = vld [vmem:[%s347 + $0x8] sm:$0xff]
        %v737 = vld [vmem:[%s347 + $0x10] sm:$0xff]
        %v738 = vld [vmem:[%s347 + $0x18] sm:$0xff]
        %v739 = vld [vmem:[%s347 + $0x20] sm:$0xff]
        %v740 = vld [vmem:[%s347 + $0x28] sm:$0xff]
        %v741 = vld [vmem:[%s347 + $0x30] sm:$0xff]
        %v742 = vld [vmem:[%s347 + $0x38] sm:$0xff]
        %v743 = vld [vmem:[%s292] sm:$0xff]
        %v744 = vld [vmem:[%s292 + $0x8] sm:$0xff]
        %v745 = vld [vmem:[%s292 + $0x10] sm:$0xff]
        %v746 = vld [vmem:[%s292 + $0x18] sm:$0xff]
        %v747 = vld [vmem:[%s292 + $0x20] sm:$0xff]
        %v748 = vld [vmem:[%s292 + $0x28] sm:$0xff]
        %v749 = vld [vmem:[%s292 + $0x30] sm:$0xff]
        %v750 = vld [vmem:[%s292 + $0x38] sm:$0xff]
        %751 = vset.pattern.permute.xlu0 2
        %752 = vperm.xlu0 %751, %v460
        %v753 = vpop.permute.xlu0 %752
        %755 = vset.pattern.permute.xlu0 2
        %756 = vperm.xlu0 %755, %v461
        %v757 = vpop.permute.xlu0 %756
        %759 = vset.pattern.permute.xlu0 2
        %760 = vperm.xlu0 %759, %v462
        %v761 = vpop.permute.xlu0 %760
        %763 = vset.pattern.permute.xlu0 2
        %764 = vperm.xlu0 %763, %v463
        %v765 = vpop.permute.xlu0 %764
        %v767 = vmul.f32 %v727, %v753
        %v768 = vmul.f32 %v728, %v753
        %v769 = vmul.f32 %v729, %v757
        %v770 = vmul.f32 %v730, %v757
        %v771 = vmul.f32 %v731, %v761
        %v772 = vmul.f32 %v732, %v761
        %v773 = vmul.f32 %v733, %v765
        %v774 = vmul.f32 %v734, %v765
        %775 = vset.pattern.permute.xlu0 3
        %776 = vperm.xlu0 %775, %v460
        %v777 = vpop.permute.xlu0 %776
        %779 = vset.pattern.permute.xlu0 3
        %780 = vperm.xlu0 %779, %v461
        %v781 = vpop.permute.xlu0 %780
        %783 = vset.pattern.permute.xlu0 3
        %784 = vperm.xlu0 %783, %v462
        %v785 = vpop.permute.xlu0 %784
        %787 = vset.pattern.permute.xlu0 3
        %788 = vperm.xlu0 %787, %v463
        %v789 = vpop.permute.xlu0 %788
        %v791 = vmul.f32 %v777, %v735
        %v792 = vmul.f32 %v777, %v736
        %v793 = vmul.f32 %v781, %v737
        %v794 = vmul.f32 %v781, %v738
        %v795 = vmul.f32 %v785, %v739
        %v796 = vmul.f32 %v785, %v740
        %v797 = vmul.f32 %v789, %v741
        %v798 = vmul.f32 %v789, %v742
        %799 = vset.pattern.permute.xlu0 5
        %800 = vperm.xlu0 %799, %v460
        %v801 = vpop.permute.xlu0 %800
        %803 = vset.pattern.permute.xlu0 5
        %804 = vperm.xlu0 %803, %v461
        %v805 = vpop.permute.xlu0 %804
        %807 = vset.pattern.permute.xlu0 5
        %808 = vperm.xlu0 %807, %v462
        %v809 = vpop.permute.xlu0 %808
        %811 = vset.pattern.permute.xlu0 5
        %812 = vperm.xlu0 %811, %v463
        %v813 = vpop.permute.xlu0 %812
        %v815 = vmul.f32 %v801, %v743
        %v816 = vmul.f32 %v801, %v744
        %v817 = vmul.f32 %v805, %v745
        %v818 = vmul.f32 %v805, %v746
        %v819 = vmul.f32 %v809, %v747
        %v820 = vmul.f32 %v809, %v748
        %v821 = vmul.f32 %v813, %v749
        %v822 = vmul.f32 %v813, %v750
        %v823 = vsub.f32 1.0, %v815
        %v824 = vsub.f32 1.0, %v816
        %v825 = vsub.f32 1.0, %v817
        %v826 = vsub.f32 1.0, %v818
        %v827 = vsub.f32 1.0, %v819
        %v828 = vsub.f32 1.0, %v820
        %v829 = vsub.f32 1.0, %v821
        %v830 = vsub.f32 1.0, %v822
        %v831 = vmul.f32 %v791, %v823
        %v832 = vmul.f32 %v792, %v824
        %v833 = vmul.f32 %v793, %v825
        %v834 = vmul.f32 %v794, %v826
        %v835 = vmul.f32 %v795, %v827
        %v836 = vmul.f32 %v796, %v828
        %v837 = vmul.f32 %v797, %v829
        %v838 = vmul.f32 %v798, %v830
        %839 = vset.pattern.permute.xlu0 4
        %840 = vperm.xlu0 %839, %v460
        %v841 = vpop.permute.xlu0 %840
        %843 = vset.pattern.permute.xlu0 4
        %844 = vperm.xlu0 %843, %v461
        %v845 = vpop.permute.xlu0 %844
        %847 = vset.pattern.permute.xlu0 4
        %848 = vperm.xlu0 %847, %v462
        %v849 = vpop.permute.xlu0 %848
        %851 = vset.pattern.permute.xlu0 4
        %852 = vperm.xlu0 %851, %v463
        %v853 = vpop.permute.xlu0 %852
        %v855 = vsub.f32 %v831, %v841
        %v856 = vsub.f32 %v832, %v841
        %v857 = vsub.f32 %v833, %v845
        %v858 = vsub.f32 %v834, %v845
        %v859 = vsub.f32 %v835, %v849
        %v860 = vsub.f32 %v836, %v849
        %v861 = vsub.f32 %v837, %v853
        %v862 = vsub.f32 %v838, %v853
        %v863 = vadd.f32 %v855, %v767
        %v864 = vadd.f32 %v856, %v768
        %v865 = vadd.f32 %v857, %v769
        %v866 = vadd.f32 %v858, %v770
        %v867 = vadd.f32 %v859, %v771
        %v868 = vadd.f32 %v860, %v772
        %v869 = vadd.f32 %v861, %v773
        %v870 = vadd.f32 %v862, %v774
        %871 = vset.pattern.permute.xlu0 6
        %872 = vperm.xlu0 %871, %v460
        %v873 = vpop.permute.xlu0 %872
        %875 = vset.pattern.permute.xlu0 6
        %876 = vperm.xlu0 %875, %v461
        %v877 = vpop.permute.xlu0 %876
        %879 = vset.pattern.permute.xlu0 6
        %880 = vperm.xlu0 %879, %v462
        %v881 = vpop.permute.xlu0 %880
        %883 = vset.pattern.permute.xlu0 6
        %884 = vperm.xlu0 %883, %v463
        %v885 = vpop.permute.xlu0 %884
        %v887 = vmul.f32 %v873, %v743
        %v888 = vmul.f32 %v873, %v744
        %v889 = vmul.f32 %v877, %v745
        %v890 = vmul.f32 %v877, %v746
        %v891 = vmul.f32 %v881, %v747
        %v892 = vmul.f32 %v881, %v748
        %v893 = vmul.f32 %v885, %v749
        %v894 = vmul.f32 %v885, %v750
        %v895 = vsub.f32 %v863, %v887
        %v896 = vsub.f32 %v864, %v888
        %v897 = vsub.f32 %v865, %v889
        %v898 = vsub.f32 %v866, %v890
        %v899 = vsub.f32 %v867, %v891
        %v900 = vsub.f32 %v868, %v892
        %v901 = vsub.f32 %v869, %v893
        %v902 = vsub.f32 %v870, %v894
        %903 = vset.pattern.permute.xlu0 7
        %904 = vperm.xlu0 %903, %v460
        %v905 = vpop.permute.xlu0 %904
        %907 = vset.pattern.permute.xlu0 7
        %908 = vperm.xlu0 %907, %v461
        %v909 = vpop.permute.xlu0 %908
        %911 = vset.pattern.permute.xlu0 7
        %912 = vperm.xlu0 %911, %v462
        %v913 = vpop.permute.xlu0 %912
        %915 = vset.pattern.permute.xlu0 7
        %916 = vperm.xlu0 %915, %v463
        %v917 = vpop.permute.xlu0 %916
        %v919 = vsub.f32 %v895, %v905
        %v920 = vsub.f32 %v896, %v905
        %v921 = vsub.f32 %v897, %v909
        %v922 = vsub.f32 %v898, %v909
        %v923 = vsub.f32 %v899, %v913
        %v924 = vsub.f32 %v900, %v913
        %v925 = vsub.f32 %v901, %v917
        %v926 = vsub.f32 %v902, %v917
        %vm927 = vcmp.gt.f32.partialorder %v919, 0.0
        %vm928 = vcmp.gt.f32.partialorder %v920, 0.0
        %vm929 = vcmp.gt.f32.partialorder %v921, 0.0
        %vm930 = vcmp.gt.f32.partialorder %v922, 0.0
        %vm931 = vcmp.gt.f32.partialorder %v923, 0.0
        %vm932 = vcmp.gt.f32.partialorder %v924, 0.0
        %vm933 = vcmp.gt.f32.partialorder %v925, 0.0
        %vm934 = vcmp.gt.f32.partialorder %v926, 0.0
        %v935 = vsel %vm927, 1, 0
        %v936 = vsel %vm928, 1, 0
        %v937 = vsel %vm929, 1, 0
        %v938 = vsel %vm930, 1, 0
        %v939 = vsel %vm931, 1, 0
        %v940 = vsel %vm932, 1, 0
        %v941 = vsel %vm933, 1, 0
        %v942 = vsel %vm934, 1, 0
        %v943 = vcvt.s32.f32 %v935
        %v944 = vcvt.s32.f32 %v936
        %v945 = vcvt.s32.f32 %v937
        %v946 = vcvt.s32.f32 %v938
        %v947 = vcvt.s32.f32 %v939
        %v948 = vcvt.s32.f32 %v940
        %v949 = vcvt.s32.f32 %v941
        %v950 = vcvt.s32.f32 %v942
        %951 = vst [vmem:[%s330] sm:$0xff] %v943
        %952 = vst [vmem:[%s330 + $0x8] sm:$0xff] %v944
        %953 = vst [vmem:[%s330 + $0x10] sm:$0xff] %v945
        %954 = vst [vmem:[%s330 + $0x18] sm:$0xff] %v946
        %955 = vst [vmem:[%s330 + $0x20] sm:$0xff] %v947
        %956 = vst [vmem:[%s330 + $0x28] sm:$0xff] %v948
        %957 = vst [vmem:[%s330 + $0x30] sm:$0xff] %v949
        %958 = vst [vmem:[%s330 + $0x38] sm:$0xff] %v950
        %959 = vst [vmem:[%s337] sm:$0xff] %v895
        %960 = vst [vmem:[%s337 + $0x8] sm:$0xff] %v896
        %961 = vst [vmem:[%s337 + $0x10] sm:$0xff] %v897
        %962 = vst [vmem:[%s337 + $0x18] sm:$0xff] %v898
        %963 = vst [vmem:[%s337 + $0x20] sm:$0xff] %v899
        %964 = vst [vmem:[%s337 + $0x28] sm:$0xff] %v900
        %965 = vst [vmem:[%s337 + $0x30] sm:$0xff] %v901
        %966 = vst [vmem:[%s337 + $0x38] sm:$0xff] %v902
        %s967 = sand.u32 %s177, 1
        %s968 = scalar_lea.sflag [#allocation4], %s967
        %s969 = sand.u32 %s177, 1
        %s970 = smul.addr %s969, 64
        %s971 = scalar_lea.vmem [#allocation5], %s970
        %s972 = sand.u32 %s203, 1
        %s973 = scalar_lea.sflag [#allocation7], %s972
        %s974 = sand.u32 %s203, 1
        %s975 = smul.addr %s974, 64
        %s976 = scalar_lea.vmem [#allocation6], %s975
        // Predicated region
        $region49: #{tpu_custom_call.1} parent=43 // pred_check
          %p977 = pneg %p187
        $region50: #{tpu_custom_call.1} parent=43 // pred_check_branch
          %979 = sbr.rel (%p977) target = $region52
        $region51: #{tpu_custom_call.1} parent=43 // pred_region
          %s981 = ssub.s32 1024, 1024
          %982 = vsyncadd %s968, %s981
          %s983 = smul.addr %s28, 8
          %s984 = smul.addr %s983, 128
          %s985 = scalar_lea.hbm %s6, %s984
          %s986 = sshll.u32 %s971, 4
          %s987 = int_to_ptr.vmem [resolvable:$true] %s986
          %992 = dma.vmem_to_hbm [thread:$0]  %s987, 1024, %s985, %s968, 256, 256, 16
        $region52: #{tpu_custom_call.1} parent=43 // pred_fallthru
          _
        // Predicated region
        $region53: #{tpu_custom_call.1} parent=43 // pred_check
          %p993 = pneg %p213
        $region54: #{tpu_custom_call.1} parent=43 // pred_check_branch
          %995 = sbr.rel (%p993) target = $region56
        $region55: #{tpu_custom_call.1} parent=43 // pred_region
          %s997 = ssub.s32 1024, 1024
          %998 = vsyncadd %s973, %s997
          %s999 = smul.addr %s28, 8
          %s1000 = smul.addr %s999, 128
          %s1001 = scalar_lea.hbm %s7, %s1000
          %s1002 = sshll.u32 %s976, 4
          %s1003 = int_to_ptr.vmem [resolvable:$true] %s1002
          %1008 = dma.vmem_to_hbm [thread:$0]  %s1003, 1024, %s1001, %s973, 256, 256, 16
        $region56: #{tpu_custom_call.1} parent=43 // pred_fallthru
          _
      $region44: #{tpu_custom_call.1} parent=5 // pred_fallthru
        _
      %p1009 = scmp.le.s32.totalorder 2, %s23
      // Predicated region
      $region57: #{tpu_custom_call.1} parent=5 // pred_check
        %p1010 = pneg %p1009
      $region58: #{tpu_custom_call.1} parent=5 // pred_check_branch
        %1012 = sbr.rel (%p1010) target = $region60
      $region59: #{tpu_custom_call.1} parent=5 // pred_region
        %s1013 = ssub.s32 %s23, 2
        // Predicated region
        $region61: #{tpu_custom_call.1} parent=59 // pred_check
          %p1014 = pneg %p193
        $region62: #{tpu_custom_call.1} parent=59 // pred_check_branch
          %1016 = sbr.rel (%p1014) target = $region64
        $region63: #{tpu_custom_call.1} parent=59 // pred_region
          %s1017 = sand.u32 %s178, 1
          %s1018 = scalar_lea.sflag [#allocation4], %s1017
          %s1019 = sand.u32 %s178, 1
          %s1020 = smul.addr %s1019, 64
          %s1021 = scalar_lea.vmem [#allocation5], %s1020
          %1022 = dma.done %s1018, 1024
        $region64: #{tpu_custom_call.1} parent=59 // pred_fallthru
          _
        // Predicated region
        $region65: #{tpu_custom_call.1} parent=59 // pred_check
          %p1023 = pneg %p219
        $region66: #{tpu_custom_call.1} parent=59 // pred_check_branch
          %1025 = sbr.rel (%p1023) target = $region68
        $region67: #{tpu_custom_call.1} parent=59 // pred_region
          %s1026 = sand.u32 %s204, 1
          %s1027 = scalar_lea.sflag [#allocation7], %s1026
          %s1028 = sand.u32 %s204, 1
          %s1029 = smul.addr %s1028, 64
          %s1030 = scalar_lea.vmem [#allocation6], %s1029
          %1031 = dma.done %s1027, 1024
        $region68: #{tpu_custom_call.1} parent=59 // pred_fallthru
          _
      $region60: #{tpu_custom_call.1} parent=5 // pred_fallthru
        _
    $region6: #{tpu_custom_call.1} parent=1 // loop_footer
      %s27 = sadd.s32 1, %s23
    $region7: #{tpu_custom_call.1} parent=1 // loop_footer_branch
      %22 = sbr.rel target = $region3
    $region8: #{tpu_custom_call.1} parent=1 // loop_exit
      _
    %1032 = vsyncpa [#allocation3], 1
    %s1033 = scalar_lea.sflag [#allocation3], 1
    %1034 = vsyncpa %s1033, 1
    %1035 = vsyncpa [#allocation4], 1
    %s1036 = scalar_lea.sflag [#allocation4], 1
    %1037 = vsyncpa %s1036, 1
    %1038 = vsyncpa [#allocation7], 1
    %s1039 = scalar_lea.sflag [#allocation7], 1
    %1040 = vsyncpa %s1039, 1

</llo_original>
